<compile_context>
chip_gen: v6e
topology: v6e:2x2x1
jax: 0.10.0
libtpu: 0.0.40
codegen_flags: <defaults>
</compile_context>

<pallas_src>
import functools

import numpy as np
import jax
import jax.numpy as jnp
from jax.experimental import pallas as pl
from jax.experimental.pallas import tpu as pltpu


def _spatial_gradient_kernel(mask_ref, x_ref, o_ref, *, W, L, scale):
    # mask_ref: (4, L) f32 boundary masks [first_col, last_col, first_row, last_row]
    # x_ref:    (nb, L) block -- one flattened (H*W) image per row
    # o_ref:    (nb, 2*L) block -- columns [0, L) = d/dx, [L, 2L) = d/dy
    x = x_ref[...].astype(jnp.float32)

    first_col = mask_ref[0:1, :] != 0.0   # c == 0
    last_col = mask_ref[1:2, :] != 0.0    # c == W-1
    first_row = mask_ref[2:3, :] != 0.0   # r == 0
    last_row = mask_ref[3:4, :] != 0.0    # r == H-1

    # --- horizontal neighbours (replicate clamped), lane rotations on XLU ---
    xl = jnp.where(first_col, x, pltpu.roll(x, 1, axis=1))          # x[r, c-1]
    xr = jnp.where(last_col, x, pltpu.roll(x, L - 1, axis=1))       # x[r, c+1]

    dh = xr - xl                    # [-1, 0, 1]  horizontal diff
    sh = xl + 2.0 * x + xr          # [ 1, 2, 1]  horizontal smooth

    # --- vertical neighbours: roll by one full row, replicate first/last row ---
    dh_up = jnp.where(first_row, dh, pltpu.roll(dh, W, axis=1))     # dh[r-1, c]
    dh_dn = jnp.where(last_row, dh, pltpu.roll(dh, L - W, axis=1))  # dh[r+1, c]
    sh_up = jnp.where(first_row, sh, pltpu.roll(sh, W, axis=1))     # sh[r-1, c]
    sh_dn = jnp.where(last_row, sh, pltpu.roll(sh, L - W, axis=1))  # sh[r+1, c]

    gx = (dh_up + 2.0 * dh + dh_dn) * scale     # sobel d/dx
    gy = (sh_dn - sh_up) * scale                # sobel d/dy

    o_ref[:, :L] = gx.astype(o_ref.dtype)
    o_ref[:, L:] = gy.astype(o_ref.dtype)


def _pick_block_rows(N, L, itemsize):
    """Images per grid step + VMEM limit, derived from physical VMEM."""
    try:
        vmem_phys = int(pltpu.get_tpu_info().vmem_capacity_bytes)
    except Exception:
        vmem_phys = 64 * 1024 * 1024            # conservative: v7x per-TC VMEM
    if vmem_phys < (16 << 20):
        vmem_phys = 64 * 1024 * 1024
    vmem_limit = min(int(vmem_phys * 0.8), 96 * 1024 * 1024)

    # Per image-row cost: double-buffered input (L) + output (2L) blocks at the
    # input dtype, plus ~6 live f32 block-sized temporaries in the kernel body.
    bytes_per_row = L * (2 * 3 * itemsize + 6 * 4)
    n_blk = max(1, int(vmem_limit * 0.6) // bytes_per_row)

    # HBM-bound on v5e/v6e: ~2-4 MiB of input per step amortizes the ~0.35 us
    # per-step overhead; larger blocks only add VMEM pressure.
    n_blk = min(n_blk, max(1, (4 << 20) // (itemsize * L)))
    n_blk = min(n_blk, N)

    # Keep >= 2 grid steps when there is enough work so the "parallel" grid
    # axis can be sharded across both v7x TensorCores.
    if N >= 16:
        half = (((N + 1) // 2) + 7) // 8 * 8
        n_blk = min(n_blk, half)
    if n_blk >= 8:                              # sublane-aligned when possible
        n_blk = (n_blk // 8) * 8
    return n_blk, vmem_limit


def spatial_gradient(x, mode: str = "sobel", order: int = 1, normalized: bool = True):
    """Pallas implementation of SpatialGradient.forward (sobel, order=1)."""
    if x.ndim != 4:
        raise ValueError(f"Invalid input shape, expected BxCxHxW, got {x.shape}")
    if mode != "sobel" or order != 1:
        # TODO(synk): only mode='sobel', order=1 (the module defaults) are implemented.
        raise NotImplementedError("Only sobel / order=1 is implemented")

    B, C, H, W = x.shape
    N, L = B * C, H * W
    # normalize_kernel2d divides by sum(|kernel|) == 8 for the 3x3 sobel taps.
    scale = (1.0 / 8.0) if normalized else 1.0

    # Free (contiguous) reshape: lane axis carries the whole flattened image.
    x_flat = x.reshape(N, L)

    # Precomputed boundary masks (hoisted out of the kernel: no per-step
    # iota or integer modulo on device).
    col = np.arange(L, dtype=np.int64) % W
    flat = np.arange(L, dtype=np.int64)
    masks = jnp.asarray(
        np.stack([col == 0, col == W - 1, flat < W, flat >= L - W]).astype(np.float32)
    )

    itemsize = jnp.dtype(x.dtype).itemsize
    n_blk, vmem_limit = _pick_block_rows(N, L, itemsize)
    grid = (pl.cdiv(N, n_blk),)
    # TODO(synk): a single image whose footprint (~12x H*W f32 bytes) no longer
    # fits VMEM would additionally need H-tiling with a 1-row halo.

    kernel = functools.partial(_spatial_gradient_kernel, W=W, L=L, scale=scale)
    cost = pl.CostEstimate(
        flops=16 * N * L,
        transcendentals=0,
        bytes_accessed=3 * N * L * itemsize,    # 1x read + 2x write
    )

    out = pl.pallas_call(
        kernel,
        out_shape=jax.ShapeDtypeStruct((N, 2 * L), x.dtype),
        grid_spec=pltpu.PrefetchScalarGridSpec(
            num_scalar_prefetch=0,
            grid=grid,
            in_specs=[
                pl.BlockSpec((4, L), lambda n: (0, 0)),       # constant block
                pl.BlockSpec((n_blk, L), lambda n: (n, 0)),
            ],
            out_specs=pl.BlockSpec((n_blk, 2 * L), lambda n: (n, 0)),
        ),
        compiler_params=pltpu.CompilerParams(
            dimension_semantics=("parallel",),
            vmem_limit_bytes=vmem_limit,
        ),
        cost_estimate=cost,
    )(masks, x_flat)

    # Free reshape back to the PyTorch output layout.
    return out.reshape(B, C, 2, H, W)


def _reference_spatial_gradient(x, normalized: bool = True):
    """Pure-JAX reference (explicit 3x3 taps, edge padding) for correctness."""
    kx = np.array([[-1.0, 0.0, 1.0], [-2.0, 0.0, 2.0], [-1.0, 0.0, 1.0]])
    ky = kx.T.copy()
    if normalized:
        kx = kx / np.abs(kx).sum()
        ky = ky / np.abs(ky).sum()
    B, C, H, W = x.shape
    xp = jnp.pad(x, ((0, 0), (0, 0), (1, 1), (1, 1)), mode="edge").astype(jnp.float32)
    gx = jnp.zeros((B, C, H, W), jnp.float32)
    gy = jnp.zeros((B, C, H, W), jnp.float32)
    for i in range(3):
        for j in range(3):
            win = xp[:, :, i:i + H, j:j + W]
            gx = gx + float(kx[i][j]) * win
            gy = gy + float(ky[i][j]) * win
    return jnp.stack([gx, gy], axis=2).astype(x.dtype)


if __name__ == "__main__":
    key = jax.random.PRNGKey(0)
    x = jax.random.normal(key, (2, 4, 16, 16), dtype=jnp.float32)

    out = jax.block_until_ready(spatial_gradient(x, mode="sobel", order=1, normalized=True))
    assert out.shape == (2, 4, 2, 16, 16), out.shape
    ref = jax.block_until_ready(_reference_spatial_gradient(x))
    np.testing.assert_allclose(np.asarray(out), np.asarray(ref), rtol=1e-5, atol=1e-5)

    # Extra robustness check: >= 2 grid steps and a partial last block.
    x2 = jax.random.normal(jax.random.PRNGKey(0), (3, 7, 16, 16), dtype=jnp.float32)
    out2 = jax.block_until_ready(spatial_gradient(x2))
    ref2 = jax.block_until_ready(_reference_spatial_gradient(x2))
    np.testing.assert_allclose(np.asarray(out2), np.asarray(ref2), rtol=1e-5, atol=1e-5)

    print("KERNEL_OK")
</pallas_src>

<mosaic_0001>
module attributes {stable_mosaic.version = 11 : i64} {
  func.func @_spatial_gradient_kernel(%arg0: i32, %arg1: memref<4x256xf32, #tpu.memory_space<vmem>>, %arg2: memref<8x256xf32, #tpu.memory_space<vmem>>, %arg3: memref<8x512xf32, #tpu.memory_space<vmem>>) attributes {dimension_semantics = [#tpu.dimension_semantics<parallel>], iteration_bounds = array<i64: 1>, scalar_prefetch = 0 : i64, scratch_operands = 0 : i64, tpu.core_type = #tpu.core_type<tc>, window_params = [{pipeline_mode = #tpu.pipeline_mode<synchronous>, transform_indices = @transform_0, window_bounds = array<i64: 4, 256>}, {transform_indices = @transform_1, window_bounds = array<i64: 8, 256>}, {transform_indices = @transform_2, window_bounds = array<i64: 8, 512>}]} {
    %c0 = arith.constant 0 : index
    %c0_0 = arith.constant 0 : index
    %0 = vector.load %arg2[%c0, %c0_0] : memref<8x256xf32, #tpu.memory_space<vmem>>, vector<8x256xf32>
    %c0_1 = arith.constant 0 : index
    %c0_2 = arith.constant 0 : index
    %1 = vector.load %arg1[%c0_1, %c0_2] : memref<4x256xf32, #tpu.memory_space<vmem>>, vector<1x256xf32>
    %cst = arith.constant 0.000000e+00 : f32
    %2 = vector.broadcast %cst : f32 to vector<1x256xf32>
    %3 = arith.cmpf one, %1, %2 : vector<1x256xf32>
    %c1 = arith.constant 1 : index
    %c0_3 = arith.constant 0 : index
    %4 = vector.load %arg1[%c1, %c0_3] : memref<4x256xf32, #tpu.memory_space<vmem>>, vector<1x256xf32>
    %cst_4 = arith.constant 0.000000e+00 : f32
    %5 = vector.broadcast %cst_4 : f32 to vector<1x256xf32>
    %6 = arith.cmpf one, %4, %5 : vector<1x256xf32>
    %c2 = arith.constant 2 : index
    %c0_5 = arith.constant 0 : index
    %7 = vector.load %arg1[%c2, %c0_5] : memref<4x256xf32, #tpu.memory_space<vmem>>, vector<1x256xf32>
    %cst_6 = arith.constant 0.000000e+00 : f32
    %8 = vector.broadcast %cst_6 : f32 to vector<1x256xf32>
    %9 = arith.cmpf one, %7, %8 : vector<1x256xf32>
    %c3 = arith.constant 3 : index
    %c0_7 = arith.constant 0 : index
    %10 = vector.load %arg1[%c3, %c0_7] : memref<4x256xf32, #tpu.memory_space<vmem>>, vector<1x256xf32>
    %cst_8 = arith.constant 0.000000e+00 : f32
    %11 = vector.broadcast %cst_8 : f32 to vector<1x256xf32>
    %12 = arith.cmpf one, %10, %11 : vector<1x256xf32>
    %c1_i32 = arith.constant 1 : i32
    %13 = tpu.dynamic_rotate %0 by %c1_i32 dim 1 : vector<8x256xf32>, i32 -> vector<8x256xf32>
    %14 = vector.shape_cast %3 : vector<1x256xi1> to vector<1x256xi1>
    %15 = vector.broadcast %14 : vector<1x256xi1> to vector<8x256xi1>
    %16 = arith.select %15, %0, %13 : vector<8x256xi1>, vector<8x256xf32>
    %c255_i32 = arith.constant 255 : i32
    %17 = tpu.dynamic_rotate %0 by %c255_i32 dim 1 : vector<8x256xf32>, i32 -> vector<8x256xf32>
    %18 = vector.shape_cast %6 : vector<1x256xi1> to vector<1x256xi1>
    %19 = vector.broadcast %18 : vector<1x256xi1> to vector<8x256xi1>
    %20 = arith.select %19, %0, %17 : vector<8x256xi1>, vector<8x256xf32>
    %21 = arith.subf %20, %16 : vector<8x256xf32>
    %cst_9 = arith.constant 2.000000e+00 : f32
    %22 = vector.broadcast %cst_9 : f32 to vector<8x256xf32>
    %23 = arith.mulf %22, %0 : vector<8x256xf32>
    %24 = arith.addf %16, %23 : vector<8x256xf32>
    %25 = arith.addf %24, %20 : vector<8x256xf32>
    %c16_i32 = arith.constant 16 : i32
    %26 = tpu.dynamic_rotate %21 by %c16_i32 dim 1 : vector<8x256xf32>, i32 -> vector<8x256xf32>
    %27 = vector.shape_cast %9 : vector<1x256xi1> to vector<1x256xi1>
    %28 = vector.broadcast %27 : vector<1x256xi1> to vector<8x256xi1>
    %29 = arith.select %28, %21, %26 : vector<8x256xi1>, vector<8x256xf32>
    %c240_i32 = arith.constant 240 : i32
    %30 = tpu.dynamic_rotate %21 by %c240_i32 dim 1 : vector<8x256xf32>, i32 -> vector<8x256xf32>
    %31 = vector.shape_cast %12 : vector<1x256xi1> to vector<1x256xi1>
    %32 = vector.broadcast %31 : vector<1x256xi1> to vector<8x256xi1>
    %33 = arith.select %32, %21, %30 : vector<8x256xi1>, vector<8x256xf32>
    %c16_i32_10 = arith.constant 16 : i32
    %34 = tpu.dynamic_rotate %25 by %c16_i32_10 dim 1 : vector<8x256xf32>, i32 -> vector<8x256xf32>
    %35 = vector.shape_cast %9 : vector<1x256xi1> to vector<1x256xi1>
    %36 = vector.broadcast %35 : vector<1x256xi1> to vector<8x256xi1>
    %37 = arith.select %36, %25, %34 : vector<8x256xi1>, vector<8x256xf32>
    %c240_i32_11 = arith.constant 240 : i32
    %38 = tpu.dynamic_rotate %25 by %c240_i32_11 dim 1 : vector<8x256xf32>, i32 -> vector<8x256xf32>
    %39 = vector.shape_cast %12 : vector<1x256xi1> to vector<1x256xi1>
    %40 = vector.broadcast %39 : vector<1x256xi1> to vector<8x256xi1>
    %41 = arith.select %40, %25, %38 : vector<8x256xi1>, vector<8x256xf32>
    %cst_12 = arith.constant 2.000000e+00 : f32
    %42 = vector.broadcast %cst_12 : f32 to vector<8x256xf32>
    %43 = arith.mulf %42, %21 : vector<8x256xf32>
    %44 = arith.addf %29, %43 : vector<8x256xf32>
    %45 = arith.addf %44, %33 : vector<8x256xf32>
    %cst_13 = arith.constant 1.250000e-01 : f32
    %46 = vector.broadcast %cst_13 : f32 to vector<8x256xf32>
    %47 = arith.mulf %45, %46 : vector<8x256xf32>
    %48 = arith.subf %41, %37 : vector<8x256xf32>
    %cst_14 = arith.constant 1.250000e-01 : f32
    %49 = vector.broadcast %cst_14 : f32 to vector<8x256xf32>
    %50 = arith.mulf %48, %49 : vector<8x256xf32>
    %c0_15 = arith.constant 0 : index
    %c0_16 = arith.constant 0 : index
    %51 = vector.load %arg3[%c0_15, %c0_16] : memref<8x512xf32, #tpu.memory_space<vmem>>, vector<8x256xf32>
    tpu.vector_store %arg3[%c0_15, %c0_16], %47 {strides = array<i32>} : memref<8x512xf32, #tpu.memory_space<vmem>>, vector<8x256xf32>,
    %c0_17 = arith.constant 0 : index
    %c256 = arith.constant 256 : index
    %52 = vector.load %arg3[%c0_17, %c256] : memref<8x512xf32, #tpu.memory_space<vmem>>, vector<8x256xf32>
    tpu.vector_store %arg3[%c0_17, %c256], %50 {strides = array<i32>} : memref<8x512xf32, #tpu.memory_space<vmem>>, vector<8x256xf32>,
    return
  }
  func.func @transform_0(%arg0: i32) -> (i32, i32) {
    %c0_i32 = arith.constant 0 : i32
    %c0_i32_0 = arith.constant 0 : i32
    %c0_i32_1 = arith.constant 0 : i32
    return %c0_i32, %c0_i32_0 : i32, i32
  }
  func.func @transform_1(%arg0: i32) -> (i32, i32) {
    %c0_i32 = arith.constant 0 : i32
    %c0_i32_0 = arith.constant 0 : i32
    return %arg0, %c0_i32 : i32, i32
  }
  func.func @transform_2(%arg0: i32) -> (i32, i32) {
    %c0_i32 = arith.constant 0 : i32
    %c0_i32_0 = arith.constant 0 : i32
    return %arg0, %c0_i32 : i32, i32
  }
}

</mosaic_0001>

<llo_original>
// kernel: tpu_custom_call.1
$region0: #{tpu_custom_call.1}
  #allocation0 [shape = 'u32[]', space=smem, size = 0x4, offset = 0x4, fixed_abs, tag = 'smem constant byte address 0x4 - core index']
  #allocation1 [shape = 'u32[144,128]{1,0:T(1,128)}', space=vmem, size = 0x12000, scoped, tag = 'internal scratch']
  %s0 = inlined_call_operand.hbm [shape: f32[4,256], index: 0, kind: input, shape index: {}]
  %s1 = inlined_call_operand.hbm [shape: f32[8,256], index: 1, kind: input, shape index: {}]
  %s2 = inlined_call_operand.hbm [shape: f32[8,512], index: 2, kind: output, shape index: {}]
  %s3 = sld [smem:[#allocation0]]
  $region26: #{tpu_custom_call.1} parent=0
    _
  %s5 = ssub.s32 1, %s3
  %s6 = scalar_select 0, %s5, %s3
  $region1: #{tpu_custom_call.1} parent=0
    #allocation2 [shape = 'u8[4096]{0}', space=vmem, size = 0x1000, scoped, tag = 'input window, operand 0, single buffered']
    #allocation3 [shape = 's32[1]{0}', space=sflag, size = 0x4, scoped, tag = 'scoped memory for tpu_custom_call.1']
    #allocation4 [shape = 's32[1]{0}', space=sflag, size = 0x4, scoped, tag = 'scoped memory for tpu_custom_call.1']
    #allocation5 [shape = 'u8[8192]{0}', space=vmem, size = 0x2000, scoped, tag = 'input window, operand 1, single buffered']
    #allocation6 [shape = 's32[1]{0}', space=sflag, size = 0x4, scoped, tag = 'scoped memory for tpu_custom_call.1']
    #allocation7 [shape = 'u8[16384]{0}', space=vmem, size = 0x4000, scoped, tag = 'output window, operand 0, single buffered']
    %7 = vsyncpa [#allocation3], 0
    %8 = vsyncpa [#allocation6], 0
    %9 = vsyncpa [#allocation4], 0
    // Predicated region
    $region2: #{tpu_custom_call.1} parent=1 // pred_check
      _
    $region3: #{tpu_custom_call.1} parent=1 // pred_check_branch
      %11 = sbr.rel (0) target = $region5
    $region4: #{tpu_custom_call.1} parent=1 // pred_region
      %s13 = ssub.s32 128, 128
      %14 = vsyncadd [#allocation3], %s13
      %s16 = sshll.u32 [#allocation2], 4
      %s17 = int_to_ptr.vmem [resolvable:$true] %s16
      %19 = dma.hbm_to_vmem [thread:$0]  %s0, 128, %s17, [#allocation3]
    $region5: #{tpu_custom_call.1} parent=1 // pred_fallthru
      _
    // Predicated region
    $region6: #{tpu_custom_call.1} parent=1 // pred_check
      _
    $region7: #{tpu_custom_call.1} parent=1 // pred_check_branch
      %21 = sbr.rel (0) target = $region9
    $region8: #{tpu_custom_call.1} parent=1 // pred_region
      %s23 = ssub.s32 256, 256
      %24 = vsyncadd [#allocation6], %s23
      %s26 = sshll.u32 [#allocation5], 4
      %s27 = int_to_ptr.vmem [resolvable:$true] %s26
      %29 = dma.hbm_to_vmem [thread:$0]  %s1, 256, %s27, [#allocation6]
    $region9: #{tpu_custom_call.1} parent=1 // pred_fallthru
      _
    // Predicated region
    $region10: #{tpu_custom_call.1} parent=1 // pred_check
      _
    $region11: #{tpu_custom_call.1} parent=1 // pred_check_branch
      %31 = sbr.rel (0) target = $region13
    $region12: #{tpu_custom_call.1} parent=1 // pred_region
      %32 = dma.done [#allocation3], 128
    $region13: #{tpu_custom_call.1} parent=1 // pred_fallthru
      _
    // Predicated region
    $region14: #{tpu_custom_call.1} parent=1 // pred_check
      _
    $region15: #{tpu_custom_call.1} parent=1 // pred_check_branch
      %34 = sbr.rel (0) target = $region17
    $region16: #{tpu_custom_call.1} parent=1 // pred_region
      %35 = dma.done [#allocation6], 256
    $region17: #{tpu_custom_call.1} parent=1 // pred_fallthru
      _
    %v36 = vld [vmem:[#allocation5] sm:$0xff]
    %v37 = vld [vmem:[#allocation5 + $0x8] sm:$0xff]
    %v38 = vld [vmem:[#allocation2] ss:$4 sm:$0x3]
    %vm39 = vcmp.ne.f32.partialorder %v38, 0.0
    %s40 = scalar_lea.vmem [#allocation2], 1
    %v41 = vld [vmem:[%s40] ss:$4 sm:$0x3]
    %vm42 = vcmp.ne.f32.partialorder %v41, 0.0
    %s43 = scalar_lea.vmem [#allocation2], 2
    %v44 = vld [vmem:[%s43] ss:$4 sm:$0x3]
    %vm45 = vcmp.ne.f32.partialorder %v44, 0.0
    %s46 = scalar_lea.vmem [#allocation2], 3
    %v47 = vld [vmem:[%s46] ss:$4 sm:$0x3]
    %vm48 = vcmp.ne.f32.partialorder %v47, 0.0
    %49 = vrot.lane.b32.xlu0 %v36, 1
    %v50 = vpop.permute.xlu0 %49
    %51 = vrot.lane.b32.xlu0 %v37, 1
    %v52 = vpop.permute.xlu0 %51
    %v53 = vlaneseq
    %v54 = vand.u32 %v53, 127
    %vm55 = vcmp.lt.s32.totalorder %v54, 1
    %v56 = vsel %vm55, %v50, %v52
    %v57 = vsel %vm55, %v52, %v50
    %v58 = vsel %vm39, 1, 0
    %v59 = vlaneseq
    %v60 = vshrl.u32 %v59, 7
    %v61 = vsub.s32 0, %v60
    %v62 = vrot.slane %v58, %v61
    %v63 = vlaneseq
    %v64 = vshrl.u32 %v63, 7
    %v65 = vsub.s32 1, %v64
    %v66 = vrot.slane %v58, %v65
    %vm67 = vcmp.eq.s32.totalorder %v62, 1
    %vm68 = vcmp.eq.s32.totalorder %v66, 1
    %v69 = vsel %vm67, %v36, %v57
    %v70 = vsel %vm68, %v37, %v56
    %71 = vrot.lane.b32.xlu0 %v36, 127
    %v72 = vpop.permute.xlu0 %71
    %73 = vrot.lane.b32.xlu0 %v37, 127
    %v74 = vpop.permute.xlu0 %73
    %vm75 = vcmp.lt.s32.totalorder %v54, 127
    %v76 = vsel %vm75, %v72, %v74
    %v77 = vsel %vm75, %v74, %v72
    %v78 = vsel %vm42, 1, 0
    %v79 = vlaneseq
    %v80 = vshrl.u32 %v79, 7
    %v81 = vsub.s32 0, %v80
    %v82 = vrot.slane %v78, %v81
    %v83 = vlaneseq
    %v84 = vshrl.u32 %v83, 7
    %v85 = vsub.s32 1, %v84
    %v86 = vrot.slane %v78, %v85
    %vm87 = vcmp.eq.s32.totalorder %v82, 1
    %vm88 = vcmp.eq.s32.totalorder %v86, 1
    %v89 = vsel %vm87, %v36, %v76
    %v90 = vsel %vm88, %v37, %v77
    %v91 = vsub.f32 %v89, %v69
    %v92 = vsub.f32 %v90, %v70
    %v93 = vmul.f32 %v36, 2.0
    %v94 = vmul.f32 %v37, 2.0
    %v95 = vadd.f32 %v69, %v93
    %v96 = vadd.f32 %v70, %v94
    %v97 = vadd.f32 %v95, %v89
    %v98 = vadd.f32 %v96, %v90
    %99 = vrot.lane.b32.xlu0 %v91, 16
    %v100 = vpop.permute.xlu0 %99
    %101 = vrot.lane.b32.xlu0 %v92, 16
    %v102 = vpop.permute.xlu0 %101
    %vm103 = vcmp.lt.s32.totalorder %v54, 16
    %v104 = vsel %vm103, %v100, %v102
    %v105 = vsel %vm103, %v102, %v100
    %v106 = vsel %vm45, 1, 0
    %v107 = vlaneseq
    %v108 = vshrl.u32 %v107, 7
    %v109 = vsub.s32 0, %v108
    %v110 = vrot.slane %v106, %v109
    %v111 = vlaneseq
    %v112 = vshrl.u32 %v111, 7
    %v113 = vsub.s32 1, %v112
    %v114 = vrot.slane %v106, %v113
    %vm115 = vcmp.eq.s32.totalorder %v110, 1
    %vm116 = vcmp.eq.s32.totalorder %v114, 1
    %v117 = vsel %vm115, %v91, %v105
    %v118 = vsel %vm116, %v92, %v104
    %119 = vrot.lane.b32.xlu0 %v91, 112
    %v120 = vpop.permute.xlu0 %119
    %121 = vrot.lane.b32.xlu0 %v92, 112
    %v122 = vpop.permute.xlu0 %121
    %vm123 = vcmp.lt.s32.totalorder %v54, 112
    %v124 = vsel %vm123, %v120, %v122
    %v125 = vsel %vm123, %v122, %v120
    %v126 = vsel %vm48, 1, 0
    %v127 = vlaneseq
    %v128 = vshrl.u32 %v127, 7
    %v129 = vsub.s32 0, %v128
    %v130 = vrot.slane %v126, %v129
    %v131 = vlaneseq
    %v132 = vshrl.u32 %v131, 7
    %v133 = vsub.s32 1, %v132
    %v134 = vrot.slane %v126, %v133
    %vm135 = vcmp.eq.s32.totalorder %v130, 1
    %vm136 = vcmp.eq.s32.totalorder %v134, 1
    %v137 = vsel %vm135, %v91, %v124
    %v138 = vsel %vm136, %v92, %v125
    %139 = vrot.lane.b32.xlu0 %v97, 16
    %v140 = vpop.permute.xlu0 %139
    %141 = vrot.lane.b32.xlu0 %v98, 16
    %v142 = vpop.permute.xlu0 %141
    %v143 = vsel %vm103, %v140, %v142
    %v144 = vsel %vm103, %v142, %v140
    %v145 = vsel %vm115, %v97, %v144
    %v146 = vsel %vm116, %v98, %v143
    %147 = vrot.lane.b32.xlu0 %v97, 112
    %v148 = vpop.permute.xlu0 %147
    %149 = vrot.lane.b32.xlu0 %v98, 112
    %v150 = vpop.permute.xlu0 %149
    %v151 = vsel %vm123, %v148, %v150
    %v152 = vsel %vm123, %v150, %v148
    %v153 = vsel %vm135, %v97, %v151
    %v154 = vsel %vm136, %v98, %v152
    %v155 = vmul.f32 %v91, 2.0
    %v156 = vmul.f32 %v92, 2.0
    %v157 = vadd.f32 %v117, %v155
    %v158 = vadd.f32 %v118, %v156
    %v159 = vadd.f32 %v157, %v137
    %v160 = vadd.f32 %v158, %v138
    %v161 = vmul.f32 %v159, 0.125
    %v162 = vmul.f32 %v160, 0.125
    %v163 = vsub.f32 %v153, %v145
    %v164 = vsub.f32 %v154, %v146
    %v165 = vmul.f32 %v163, 0.125
    %v166 = vmul.f32 %v164, 0.125
    %167 = vst [vmem:[#allocation7] sm:$0xff] %v161
    %168 = vst [vmem:[#allocation7 + $0x8] sm:$0xff] %v162
    %169 = vst [vmem:[#allocation7 + $0x10] sm:$0xff] %v165
    %170 = vst [vmem:[#allocation7 + $0x18] sm:$0xff] %v166
    // Predicated region
    $region18: #{tpu_custom_call.1} parent=1 // pred_check
      _
    $region19: #{tpu_custom_call.1} parent=1 // pred_check_branch
      %172 = sbr.rel (0) target = $region21
    $region20: #{tpu_custom_call.1} parent=1 // pred_region
      %s174 = ssub.s32 512, 512
      %175 = vsyncadd [#allocation4], %s174
      %s177 = sshll.u32 [#allocation7], 4
      %s178 = int_to_ptr.vmem [resolvable:$true] %s177
      %180 = dma.vmem_to_hbm [thread:$0]  %s178, 512, %s2, [#allocation4]
    $region21: #{tpu_custom_call.1} parent=1 // pred_fallthru
      _
    // Predicated region
    $region22: #{tpu_custom_call.1} parent=1 // pred_check
      _
    $region23: #{tpu_custom_call.1} parent=1 // pred_check_branch
      %182 = sbr.rel (0) target = $region25
    $region24: #{tpu_custom_call.1} parent=1 // pred_region
      %183 = dma.done [#allocation4], 512
    $region25: #{tpu_custom_call.1} parent=1 // pred_fallthru
      _
    %184 = vsyncpa [#allocation3], 1
    %185 = vsyncpa [#allocation6], 1
    %186 = vsyncpa [#allocation4], 1

</llo_original>
